<compile_context>
chip_gen: v6e
topology: v6e:2x2x1
jax: 0.10.0
libtpu: 0.0.40
codegen_flags: <defaults>
</compile_context>

<pallas_src>
import jax
import jax.numpy as jnp
from jax.experimental import pallas as pl
from jax.experimental.pallas import tpu as pltpu

_VMEM_BUDGET_BYTES = 12 * 1024 * 1024   # double-buffered in+out per grid step
_MAX_SPATIAL_TILE = 65536               # elements of spatial per block (cap)
_MAC_UNROLL_LIMIT = 512                 # scalar-MAC path while C_in*C_out small
_FOLD_N_UNROLL_LIMIT = 256              # fold batch only for tiny problems


def _mac_kernel(w_ref, x_ref, o_ref):
    """Scalar(SMEM weight) x vector MAC path for small channel counts.

    w_ref : (C_out, C_in) f32 in SMEM (resident).
    x_ref : (n_blk, C_in, *spatial) in VMEM.
    o_ref : (n_blk, C_out, *spatial) in VMEM.
    """
    n_blk = x_ref.shape[0]
    c_in = x_ref.shape[1]
    c_out = o_ref.shape[1]
    for n in range(n_blk):
        # Upcast once (f32 accumulation); no per-channel recast inside the loops.
        x = x_ref[n].astype(jnp.float32)          # (C_in, *spatial)
        for co in range(c_out):
            acc = w_ref[co, 0] * x[0]
            for ci in range(1, c_in):
                acc = acc + w_ref[co, ci] * x[ci]
            o_ref[n, co] = acc.astype(o_ref.dtype)


def _dot_kernel(w_ref, x_ref, o_ref):
    """MXU path for larger channel counts.

    w_ref : (C_out, C_in) in VMEM (native dtype -> native bf16 MXU when bf16).
    x_ref : (1, C_in, T) in VMEM.
    o_ref : (1, C_out, T) in VMEM.
    """
    o_ref[0] = jnp.dot(
        w_ref[...], x_ref[0], preferred_element_type=jnp.float32
    ).astype(o_ref.dtype)


def projector_block(x_nchw, weight):
    """1x1 conv, no bias (PyTorch Conv2d semantics).

    x_nchw: (N, C_in, H, W)
    weight: (C_out, C_in, 1, 1)
    returns (N, C_out, H, W)
    """
    N, C_in, H, W = x_nchw.shape
    C_out = weight.shape[0]
    HW = H * W
    out_dtype = x_nchw.dtype

    in_item = jnp.dtype(x_nchw.dtype).itemsize
    out_item = jnp.dtype(out_dtype).itemsize

    # VMEM-budget-aware spatial tile (bytes per spatial element, x2 double-buffered).
    bytes_per_elem = 2 * (C_in * in_item + C_out * out_item)
    max_spatial = max(
        128,
        min(_MAX_SPATIAL_TILE, (_VMEM_BUDGET_BYTES // bytes_per_elem) // 128 * 128),
    )

    w2d = weight.reshape(C_out, C_in)
    use_mac = (C_in * C_out) <= _MAC_UNROLL_LIMIT

    cost = pl.CostEstimate(
        flops=int(2 * N * HW * C_in * C_out),
        transcendentals=0,
        bytes_accessed=int(
            N * HW * (C_in * in_item + C_out * out_item)
            + C_out * C_in * jnp.dtype(weight.dtype).itemsize
        ),
    )
    cparams = pltpu.CompilerParams(dimension_semantics=("parallel", "parallel"))

    def _fold_batch(num_spatial_tiles):
        # Fold N into one block only when the whole problem is tiny
        # (overhead-dominated regime); keeps unroll count bounded.
        return (
            num_spatial_tiles == 1
            and N * C_out * C_in <= _FOLD_N_UNROLL_LIMIT
            and N * HW * (C_in * in_item + C_out * out_item) <= _VMEM_BUDGET_BYTES
        )

    if use_mac:
        w_arg = w2d.astype(jnp.float32)                      # SMEM scalars
        w_spec = pl.BlockSpec(memory_space=pltpu.MemorySpace.SMEM)

        if HW % 128 == 0:
            # Sublane + lane dense layout: spatial -> (rows, 128).  Free reshape.
            R = HW // 128
            x_in = x_nchw.reshape(N, C_in, R, 128)
            max_rows = max(1, max_spatial // 128)
            if R <= max_rows:
                r_tile = R                                   # full dim -> always legal
            else:
                r_tile = max(8, (max_rows // 8) * 8)         # multiple of 8 sublanes
            n_tiles_sp = pl.cdiv(R, r_tile)
            n_blk = N if _fold_batch(n_tiles_sp) else 1
            grid = (pl.cdiv(N, n_blk), n_tiles_sp)

            out = pl.pallas_call(
                _mac_kernel,
                out_shape=jax.ShapeDtypeStruct((N, C_out, R, 128), out_dtype),
                grid_spec=pltpu.PrefetchScalarGridSpec(
                    num_scalar_prefetch=0,
                    grid=grid,
                    in_specs=[
                        w_spec,
                        pl.BlockSpec((n_blk, C_in, r_tile, 128),
                                     lambda i, j: (i, 0, j, 0)),
                    ],
                    out_specs=pl.BlockSpec((n_blk, C_out, r_tile, 128),
                                           lambda i, j: (i, 0, j, 0)),
                ),
                compiler_params=cparams,
                cost_estimate=cost,
            )(w_arg, x_in)
            return out.reshape(N, C_out, H, W)

        # HW not a multiple of 128: keep spatial 1-D on lanes.  Tiles are a
        # multiple of 128 (last block masked by Pallas) unless HW fits whole.
        x_in = x_nchw.reshape(N, C_in, HW)
        t_hw = HW if HW <= max_spatial else max_spatial
        n_tiles_sp = pl.cdiv(HW, t_hw)
        n_blk = N if _fold_batch(n_tiles_sp) else 1
        grid = (pl.cdiv(N, n_blk), n_tiles_sp)

        out = pl.pallas_call(
            _mac_kernel,
            out_shape=jax.ShapeDtypeStruct((N, C_out, HW), out_dtype),
            grid_spec=pltpu.PrefetchScalarGridSpec(
                num_scalar_prefetch=0,
                grid=grid,
                in_specs=[
                    w_spec,
                    pl.BlockSpec((n_blk, C_in, t_hw), lambda i, j: (i, 0, j)),
                ],
                out_specs=pl.BlockSpec((n_blk, C_out, t_hw), lambda i, j: (i, 0, j)),
            ),
            compiler_params=cparams,
            cost_estimate=cost,
        )(w_arg, x_in)
        return out.reshape(N, C_out, H, W)

    # MXU fallback for larger channel counts.  Budget-aware t_hw keeps the
    # (C_in, t_hw)/(C_out, t_hw) buffers double-bufferable on v7x's 64 MiB VMEM.
    # TODO(synk): add a reduction grid axis over C_in (+ f32 accumulator scratch)
    # if C_in ever grows large enough that a single (C_in, 128) slab overflows VMEM.
    x_in = x_nchw.reshape(N, C_in, HW)
    t_hw = HW if HW <= max_spatial else max_spatial
    grid = (N, pl.cdiv(HW, t_hw))
    out = pl.pallas_call(
        _dot_kernel,
        out_shape=jax.ShapeDtypeStruct((N, C_out, HW), out_dtype),
        grid_spec=pltpu.PrefetchScalarGridSpec(
            num_scalar_prefetch=0,
            grid=grid,
            in_specs=[
                pl.BlockSpec((C_out, C_in), lambda i, j: (0, 0)),   # resident weight
                pl.BlockSpec((1, C_in, t_hw), lambda i, j: (i, 0, j)),
            ],
            out_specs=pl.BlockSpec((1, C_out, t_hw), lambda i, j: (i, 0, j)),
        ),
        compiler_params=cparams,
        cost_estimate=cost,
    )(w2d, x_in)
    return out.reshape(N, C_out, H, W)


if __name__ == "__main__":
    # Small shapes consistent with the module: batch=2, in_features=4,
    # out_features=8, spatial=16x16.
    N, C_in, C_out, H, W = 2, 4, 8, 16, 16

    key = jax.random.PRNGKey(0)
    kx, kw = jax.random.split(key)
    x = jax.random.normal(kx, (N, C_in, H, W), dtype=jnp.float32)
    # Same shape as nn.Conv2d(C_in, C_out, 1, bias=False).weight
    weight = jax.random.normal(kw, (C_out, C_in, 1, 1), dtype=jnp.float32) * 0.1

    out = projector_block(x, weight)
    out = jax.block_until_ready(out)

    # Reference: out[n,co,h,w] = sum_ci w[co,ci] * x[n,ci,h,w]
    ref = jnp.einsum("oc,nchw->nohw", weight.reshape(C_out, C_in), x)
    assert out.shape == (N, C_out, H, W)
    assert jnp.allclose(out, ref, atol=1e-5, rtol=1e-5)

    print("KERNEL_OK")
</pallas_src>

<mosaic_0001>
module attributes {stable_mosaic.version = 11 : i64} {
  func.func @_mac_kernel(%arg0: i32, %arg1: i32, %arg2: memref<8x4xf32, #tpu.memory_space<smem>>, %arg3: memref<2x4x2x128xf32, #tpu.memory_space<vmem>>, %arg4: memref<2x8x2x128xf32, #tpu.memory_space<vmem>>) attributes {dimension_semantics = [#tpu.dimension_semantics<parallel>, #tpu.dimension_semantics<parallel>], iteration_bounds = array<i64: 1, 1>, scalar_prefetch = 0 : i64, scratch_operands = 0 : i64, tpu.core_type = #tpu.core_type<tc>, window_params = [{transform_indices = @transform_0, window_bounds = array<i64: 8, 4>}, {transform_indices = @transform_1, window_bounds = array<i64: 2, 4, 2, 128>}, {transform_indices = @transform_2, window_bounds = array<i64: 2, 8, 2, 128>}]} {
    %c0 = arith.constant 0 : index
    %c0_0 = arith.constant 0 : index
    %c0_1 = arith.constant 0 : index
    %c0_2 = arith.constant 0 : index
    %0 = vector.load %arg3[%c0, %c0_0, %c0_1, %c0_2] : memref<2x4x2x128xf32, #tpu.memory_space<vmem>>, vector<1x4x2x128xf32>
    %1 = vector.shape_cast %0 : vector<1x4x2x128xf32> to vector<4x2x128xf32>
    %c0_3 = arith.constant 0 : index
    %c0_4 = arith.constant 0 : index
    %2 = memref.load %arg2[%c0_3, %c0_4] : memref<8x4xf32, #tpu.memory_space<smem>>
    %3 = vector.extract_strided_slice %1 {offsets = [0, 0, 0], sizes = [1, 2, 128], strides = [1, 1, 1]} : vector<4x2x128xf32> to vector<1x2x128xf32>
    %4 = vector.shape_cast %3 : vector<1x2x128xf32> to vector<2x128xf32>
    %5 = vector.broadcast %2 : f32 to vector<2x128xf32>
    %6 = arith.mulf %5, %4 : vector<2x128xf32>
    %c0_5 = arith.constant 0 : index
    %c1 = arith.constant 1 : index
    %7 = memref.load %arg2[%c0_5, %c1] : memref<8x4xf32, #tpu.memory_space<smem>>
    %8 = vector.extract_strided_slice %1 {offsets = [1, 0, 0], sizes = [1, 2, 128], strides = [1, 1, 1]} : vector<4x2x128xf32> to vector<1x2x128xf32>
    %9 = vector.shape_cast %8 : vector<1x2x128xf32> to vector<2x128xf32>
    %10 = vector.broadcast %7 : f32 to vector<2x128xf32>
    %11 = arith.mulf %10, %9 : vector<2x128xf32>
    %12 = arith.addf %6, %11 : vector<2x128xf32>
    %c0_6 = arith.constant 0 : index
    %c2 = arith.constant 2 : index
    %13 = memref.load %arg2[%c0_6, %c2] : memref<8x4xf32, #tpu.memory_space<smem>>
    %14 = vector.extract_strided_slice %1 {offsets = [2, 0, 0], sizes = [1, 2, 128], strides = [1, 1, 1]} : vector<4x2x128xf32> to vector<1x2x128xf32>
    %15 = vector.shape_cast %14 : vector<1x2x128xf32> to vector<2x128xf32>
    %16 = vector.broadcast %13 : f32 to vector<2x128xf32>
    %17 = arith.mulf %16, %15 : vector<2x128xf32>
    %18 = arith.addf %12, %17 : vector<2x128xf32>
    %c0_7 = arith.constant 0 : index
    %c3 = arith.constant 3 : index
    %19 = memref.load %arg2[%c0_7, %c3] : memref<8x4xf32, #tpu.memory_space<smem>>
    %20 = vector.extract_strided_slice %1 {offsets = [3, 0, 0], sizes = [1, 2, 128], strides = [1, 1, 1]} : vector<4x2x128xf32> to vector<1x2x128xf32>
    %21 = vector.shape_cast %20 : vector<1x2x128xf32> to vector<2x128xf32>
    %22 = vector.broadcast %19 : f32 to vector<2x128xf32>
    %23 = arith.mulf %22, %21 : vector<2x128xf32>
    %24 = arith.addf %18, %23 : vector<2x128xf32>
    %c0_8 = arith.constant 0 : index
    %c0_9 = arith.constant 0 : index
    %c0_10 = arith.constant 0 : index
    %c0_11 = arith.constant 0 : index
    %25 = vector.load %arg4[%c0_8, %c0_9, %c0_10, %c0_11] : memref<2x8x2x128xf32, #tpu.memory_space<vmem>>, vector<1x1x2x128xf32>
    %26 = vector.shape_cast %25 : vector<1x1x2x128xf32> to vector<2x128xf32>
    %27 = vector.shape_cast %24 : vector<2x128xf32> to vector<1x1x2x128xf32>
    tpu.vector_store %arg4[%c0_8, %c0_9, %c0_10, %c0_11], %27 {strides = array<i32>} : memref<2x8x2x128xf32, #tpu.memory_space<vmem>>, vector<1x1x2x128xf32>,
    %c1_12 = arith.constant 1 : index
    %c0_13 = arith.constant 0 : index
    %28 = memref.load %arg2[%c1_12, %c0_13] : memref<8x4xf32, #tpu.memory_space<smem>>
    %29 = vector.extract_strided_slice %1 {offsets = [0, 0, 0], sizes = [1, 2, 128], strides = [1, 1, 1]} : vector<4x2x128xf32> to vector<1x2x128xf32>
    %30 = vector.shape_cast %29 : vector<1x2x128xf32> to vector<2x128xf32>
    %31 = vector.broadcast %28 : f32 to vector<2x128xf32>
    %32 = arith.mulf %31, %30 : vector<2x128xf32>
    %c1_14 = arith.constant 1 : index
    %c1_15 = arith.constant 1 : index
    %33 = memref.load %arg2[%c1_14, %c1_15] : memref<8x4xf32, #tpu.memory_space<smem>>
    %34 = vector.extract_strided_slice %1 {offsets = [1, 0, 0], sizes = [1, 2, 128], strides = [1, 1, 1]} : vector<4x2x128xf32> to vector<1x2x128xf32>
    %35 = vector.shape_cast %34 : vector<1x2x128xf32> to vector<2x128xf32>
    %36 = vector.broadcast %33 : f32 to vector<2x128xf32>
    %37 = arith.mulf %36, %35 : vector<2x128xf32>
    %38 = arith.addf %32, %37 : vector<2x128xf32>
    %c1_16 = arith.constant 1 : index
    %c2_17 = arith.constant 2 : index
    %39 = memref.load %arg2[%c1_16, %c2_17] : memref<8x4xf32, #tpu.memory_space<smem>>
    %40 = vector.extract_strided_slice %1 {offsets = [2, 0, 0], sizes = [1, 2, 128], strides = [1, 1, 1]} : vector<4x2x128xf32> to vector<1x2x128xf32>
    %41 = vector.shape_cast %40 : vector<1x2x128xf32> to vector<2x128xf32>
    %42 = vector.broadcast %39 : f32 to vector<2x128xf32>
    %43 = arith.mulf %42, %41 : vector<2x128xf32>
    %44 = arith.addf %38, %43 : vector<2x128xf32>
    %c1_18 = arith.constant 1 : index
    %c3_19 = arith.constant 3 : index
    %45 = memref.load %arg2[%c1_18, %c3_19] : memref<8x4xf32, #tpu.memory_space<smem>>
    %46 = vector.extract_strided_slice %1 {offsets = [3, 0, 0], sizes = [1, 2, 128], strides = [1, 1, 1]} : vector<4x2x128xf32> to vector<1x2x128xf32>
    %47 = vector.shape_cast %46 : vector<1x2x128xf32> to vector<2x128xf32>
    %48 = vector.broadcast %45 : f32 to vector<2x128xf32>
    %49 = arith.mulf %48, %47 : vector<2x128xf32>
    %50 = arith.addf %44, %49 : vector<2x128xf32>
    %c0_20 = arith.constant 0 : index
    %c1_21 = arith.constant 1 : index
    %c0_22 = arith.constant 0 : index
    %c0_23 = arith.constant 0 : index
    %51 = vector.load %arg4[%c0_20, %c1_21, %c0_22, %c0_23] : memref<2x8x2x128xf32, #tpu.memory_space<vmem>>, vector<1x1x2x128xf32>
    %52 = vector.shape_cast %51 : vector<1x1x2x128xf32> to vector<2x128xf32>
    %53 = vector.shape_cast %50 : vector<2x128xf32> to vector<1x1x2x128xf32>
    tpu.vector_store %arg4[%c0_20, %c1_21, %c0_22, %c0_23], %53 {strides = array<i32>} : memref<2x8x2x128xf32, #tpu.memory_space<vmem>>, vector<1x1x2x128xf32>,
    %c2_24 = arith.constant 2 : index
    %c0_25 = arith.constant 0 : index
    %54 = memref.load %arg2[%c2_24, %c0_25] : memref<8x4xf32, #tpu.memory_space<smem>>
    %55 = vector.extract_strided_slice %1 {offsets = [0, 0, 0], sizes = [1, 2, 128], strides = [1, 1, 1]} : vector<4x2x128xf32> to vector<1x2x128xf32>
    %56 = vector.shape_cast %55 : vector<1x2x128xf32> to vector<2x128xf32>
    %57 = vector.broadcast %54 : f32 to vector<2x128xf32>
    %58 = arith.mulf %57, %56 : vector<2x128xf32>
    %c2_26 = arith.constant 2 : index
    %c1_27 = arith.constant 1 : index
    %59 = memref.load %arg2[%c2_26, %c1_27] : memref<8x4xf32, #tpu.memory_space<smem>>
    %60 = vector.extract_strided_slice %1 {offsets = [1, 0, 0], sizes = [1, 2, 128], strides = [1, 1, 1]} : vector<4x2x128xf32> to vector<1x2x128xf32>
    %61 = vector.shape_cast %60 : vector<1x2x128xf32> to vector<2x128xf32>
    %62 = vector.broadcast %59 : f32 to vector<2x128xf32>
    %63 = arith.mulf %62, %61 : vector<2x128xf32>
    %64 = arith.addf %58, %63 : vector<2x128xf32>
    %c2_28 = arith.constant 2 : index
    %c2_29 = arith.constant 2 : index
    %65 = memref.load %arg2[%c2_28, %c2_29] : memref<8x4xf32, #tpu.memory_space<smem>>
    %66 = vector.extract_strided_slice %1 {offsets = [2, 0, 0], sizes = [1, 2, 128], strides = [1, 1, 1]} : vector<4x2x128xf32> to vector<1x2x128xf32>
    %67 = vector.shape_cast %66 : vector<1x2x128xf32> to vector<2x128xf32>
    %68 = vector.broadcast %65 : f32 to vector<2x128xf32>
    %69 = arith.mulf %68, %67 : vector<2x128xf32>
    %70 = arith.addf %64, %69 : vector<2x128xf32>
    %c2_30 = arith.constant 2 : index
    %c3_31 = arith.constant 3 : index
    %71 = memref.load %arg2[%c2_30, %c3_31] : memref<8x4xf32, #tpu.memory_space<smem>>
    %72 = vector.extract_strided_slice %1 {offsets = [3, 0, 0], sizes = [1, 2, 128], strides = [1, 1, 1]} : vector<4x2x128xf32> to vector<1x2x128xf32>
    %73 = vector.shape_cast %72 : vector<1x2x128xf32> to vector<2x128xf32>
    %74 = vector.broadcast %71 : f32 to vector<2x128xf32>
    %75 = arith.mulf %74, %73 : vector<2x128xf32>
    %76 = arith.addf %70, %75 : vector<2x128xf32>
    %c0_32 = arith.constant 0 : index
    %c2_33 = arith.constant 2 : index
    %c0_34 = arith.constant 0 : index
    %c0_35 = arith.constant 0 : index
    %77 = vector.load %arg4[%c0_32, %c2_33, %c0_34, %c0_35] : memref<2x8x2x128xf32, #tpu.memory_space<vmem>>, vector<1x1x2x128xf32>
    %78 = vector.shape_cast %77 : vector<1x1x2x128xf32> to vector<2x128xf32>
    %79 = vector.shape_cast %76 : vector<2x128xf32> to vector<1x1x2x128xf32>
    tpu.vector_store %arg4[%c0_32, %c2_33, %c0_34, %c0_35], %79 {strides = array<i32>} : memref<2x8x2x128xf32, #tpu.memory_space<vmem>>, vector<1x1x2x128xf32>,
    %c3_36 = arith.constant 3 : index
    %c0_37 = arith.constant 0 : index
    %80 = memref.load %arg2[%c3_36, %c0_37] : memref<8x4xf32, #tpu.memory_space<smem>>
    %81 = vector.extract_strided_slice %1 {offsets = [0, 0, 0], sizes = [1, 2, 128], strides = [1, 1, 1]} : vector<4x2x128xf32> to vector<1x2x128xf32>
    %82 = vector.shape_cast %81 : vector<1x2x128xf32> to vector<2x128xf32>
    %83 = vector.broadcast %80 : f32 to vector<2x128xf32>
    %84 = arith.mulf %83, %82 : vector<2x128xf32>
    %c3_38 = arith.constant 3 : index
    %c1_39 = arith.constant 1 : index
    %85 = memref.load %arg2[%c3_38, %c1_39] : memref<8x4xf32, #tpu.memory_space<smem>>
    %86 = vector.extract_strided_slice %1 {offsets = [1, 0, 0], sizes = [1, 2, 128], strides = [1, 1, 1]} : vector<4x2x128xf32> to vector<1x2x128xf32>
    %87 = vector.shape_cast %86 : vector<1x2x128xf32> to vector<2x128xf32>
    %88 = vector.broadcast %85 : f32 to vector<2x128xf32>
    %89 = arith.mulf %88, %87 : vector<2x128xf32>
    %90 = arith.addf %84, %89 : vector<2x128xf32>
    %c3_40 = arith.constant 3 : index
    %c2_41 = arith.constant 2 : index
    %91 = memref.load %arg2[%c3_40, %c2_41] : memref<8x4xf32, #tpu.memory_space<smem>>
    %92 = vector.extract_strided_slice %1 {offsets = [2, 0, 0], sizes = [1, 2, 128], strides = [1, 1, 1]} : vector<4x2x128xf32> to vector<1x2x128xf32>
    %93 = vector.shape_cast %92 : vector<1x2x128xf32> to vector<2x128xf32>
    %94 = vector.broadcast %91 : f32 to vector<2x128xf32>
    %95 = arith.mulf %94, %93 : vector<2x128xf32>
    %96 = arith.addf %90, %95 : vector<2x128xf32>
    %c3_42 = arith.constant 3 : index
    %c3_43 = arith.constant 3 : index
    %97 = memref.load %arg2[%c3_42, %c3_43] : memref<8x4xf32, #tpu.memory_space<smem>>
    %98 = vector.extract_strided_slice %1 {offsets = [3, 0, 0], sizes = [1, 2, 128], strides = [1, 1, 1]} : vector<4x2x128xf32> to vector<1x2x128xf32>
    %99 = vector.shape_cast %98 : vector<1x2x128xf32> to vector<2x128xf32>
    %100 = vector.broadcast %97 : f32 to vector<2x128xf32>
    %101 = arith.mulf %100, %99 : vector<2x128xf32>
    %102 = arith.addf %96, %101 : vector<2x128xf32>
    %c0_44 = arith.constant 0 : index
    %c3_45 = arith.constant 3 : index
    %c0_46 = arith.constant 0 : index
    %c0_47 = arith.constant 0 : index
    %103 = vector.load %arg4[%c0_44, %c3_45, %c0_46, %c0_47] : memref<2x8x2x128xf32, #tpu.memory_space<vmem>>, vector<1x1x2x128xf32>
    %104 = vector.shape_cast %103 : vector<1x1x2x128xf32> to vector<2x128xf32>
    %105 = vector.shape_cast %102 : vector<2x128xf32> to vector<1x1x2x128xf32>
    tpu.vector_store %arg4[%c0_44, %c3_45, %c0_46, %c0_47], %105 {strides = array<i32>} : memref<2x8x2x128xf32, #tpu.memory_space<vmem>>, vector<1x1x2x128xf32>,
    %c4 = arith.constant 4 : index
    %c0_48 = arith.constant 0 : index
    %106 = memref.load %arg2[%c4, %c0_48] : memref<8x4xf32, #tpu.memory_space<smem>>
    %107 = vector.extract_strided_slice %1 {offsets = [0, 0, 0], sizes = [1, 2, 128], strides = [1, 1, 1]} : vector<4x2x128xf32> to vector<1x2x128xf32>
    %108 = vector.shape_cast %107 : vector<1x2x128xf32> to vector<2x128xf32>
    %109 = vector.broadcast %106 : f32 to vector<2x128xf32>
    %110 = arith.mulf %109, %108 : vector<2x128xf32>
    %c4_49 = arith.constant 4 : index
    %c1_50 = arith.constant 1 : index
    %111 = memref.load %arg2[%c4_49, %c1_50] : memref<8x4xf32, #tpu.memory_space<smem>>
    %112 = vector.extract_strided_slice %1 {offsets = [1, 0, 0], sizes = [1, 2, 128], strides = [1, 1, 1]} : vector<4x2x128xf32> to vector<1x2x128xf32>
    %113 = vector.shape_cast %112 : vector<1x2x128xf32> to vector<2x128xf32>
    %114 = vector.broadcast %111 : f32 to vector<2x128xf32>
    %115 = arith.mulf %114, %113 : vector<2x128xf32>
    %116 = arith.addf %110, %115 : vector<2x128xf32>
    %c4_51 = arith.constant 4 : index
    %c2_52 = arith.constant 2 : index
    %117 = memref.load %arg2[%c4_51, %c2_52] : memref<8x4xf32, #tpu.memory_space<smem>>
    %118 = vector.extract_strided_slice %1 {offsets = [2, 0, 0], sizes = [1, 2, 128], strides = [1, 1, 1]} : vector<4x2x128xf32> to vector<1x2x128xf32>
    %119 = vector.shape_cast %118 : vector<1x2x128xf32> to vector<2x128xf32>
    %120 = vector.broadcast %117 : f32 to vector<2x128xf32>
    %121 = arith.mulf %120, %119 : vector<2x128xf32>
    %122 = arith.addf %116, %121 : vector<2x128xf32>
    %c4_53 = arith.constant 4 : index
    %c3_54 = arith.constant 3 : index
    %123 = memref.load %arg2[%c4_53, %c3_54] : memref<8x4xf32, #tpu.memory_space<smem>>
    %124 = vector.extract_strided_slice %1 {offsets = [3, 0, 0], sizes = [1, 2, 128], strides = [1, 1, 1]} : vector<4x2x128xf32> to vector<1x2x128xf32>
    %125 = vector.shape_cast %124 : vector<1x2x128xf32> to vector<2x128xf32>
    %126 = vector.broadcast %123 : f32 to vector<2x128xf32>
    %127 = arith.mulf %126, %125 : vector<2x128xf32>
    %128 = arith.addf %122, %127 : vector<2x128xf32>
    %c0_55 = arith.constant 0 : index
    %c4_56 = arith.constant 4 : index
    %c0_57 = arith.constant 0 : index
    %c0_58 = arith.constant 0 : index
    %129 = vector.load %arg4[%c0_55, %c4_56, %c0_57, %c0_58] : memref<2x8x2x128xf32, #tpu.memory_space<vmem>>, vector<1x1x2x128xf32>
    %130 = vector.shape_cast %129 : vector<1x1x2x128xf32> to vector<2x128xf32>
    %131 = vector.shape_cast %128 : vector<2x128xf32> to vector<1x1x2x128xf32>
    tpu.vector_store %arg4[%c0_55, %c4_56, %c0_57, %c0_58], %131 {strides = array<i32>} : memref<2x8x2x128xf32, #tpu.memory_space<vmem>>, vector<1x1x2x128xf32>,
    %c5 = arith.constant 5 : index
    %c0_59 = arith.constant 0 : index
    %132 = memref.load %arg2[%c5, %c0_59] : memref<8x4xf32, #tpu.memory_space<smem>>
    %133 = vector.extract_strided_slice %1 {offsets = [0, 0, 0], sizes = [1, 2, 128], strides = [1, 1, 1]} : vector<4x2x128xf32> to vector<1x2x128xf32>
    %134 = vector.shape_cast %133 : vector<1x2x128xf32> to vector<2x128xf32>
    %135 = vector.broadcast %132 : f32 to vector<2x128xf32>
    %136 = arith.mulf %135, %134 : vector<2x128xf32>
    %c5_60 = arith.constant 5 : index
    %c1_61 = arith.constant 1 : index
    %137 = memref.load %arg2[%c5_60, %c1_61] : memref<8x4xf32, #tpu.memory_space<smem>>
    %138 = vector.extract_strided_slice %1 {offsets = [1, 0, 0], sizes = [1, 2, 128], strides = [1, 1, 1]} : vector<4x2x128xf32> to vector<1x2x128xf32>
    %139 = vector.shape_cast %138 : vector<1x2x128xf32> to vector<2x128xf32>
    %140 = vector.broadcast %137 : f32 to vector<2x128xf32>
    %141 = arith.mulf %140, %139 : vector<2x128xf32>
    %142 = arith.addf %136, %141 : vector<2x128xf32>
    %c5_62 = arith.constant 5 : index
    %c2_63 = arith.constant 2 : index
    %143 = memref.load %arg2[%c5_62, %c2_63] : memref<8x4xf32, #tpu.memory_space<smem>>
    %144 = vector.extract_strided_slice %1 {offsets = [2, 0, 0], sizes = [1, 2, 128], strides = [1, 1, 1]} : vector<4x2x128xf32> to vector<1x2x128xf32>
    %145 = vector.shape_cast %144 : vector<1x2x128xf32> to vector<2x128xf32>
    %146 = vector.broadcast %143 : f32 to vector<2x128xf32>
    %147 = arith.mulf %146, %145 : vector<2x128xf32>
    %148 = arith.addf %142, %147 : vector<2x128xf32>
    %c5_64 = arith.constant 5 : index
    %c3_65 = arith.constant 3 : index
    %149 = memref.load %arg2[%c5_64, %c3_65] : memref<8x4xf32, #tpu.memory_space<smem>>
    %150 = vector.extract_strided_slice %1 {offsets = [3, 0, 0], sizes = [1, 2, 128], strides = [1, 1, 1]} : vector<4x2x128xf32> to vector<1x2x128xf32>
    %151 = vector.shape_cast %150 : vector<1x2x128xf32> to vector<2x128xf32>
    %152 = vector.broadcast %149 : f32 to vector<2x128xf32>
    %153 = arith.mulf %152, %151 : vector<2x128xf32>
    %154 = arith.addf %148, %153 : vector<2x128xf32>
    %c0_66 = arith.constant 0 : index
    %c5_67 = arith.constant 5 : index
    %c0_68 = arith.constant 0 : index
    %c0_69 = arith.constant 0 : index
    %155 = vector.load %arg4[%c0_66, %c5_67, %c0_68, %c0_69] : memref<2x8x2x128xf32, #tpu.memory_space<vmem>>, vector<1x1x2x128xf32>
    %156 = vector.shape_cast %155 : vector<1x1x2x128xf32> to vector<2x128xf32>
    %157 = vector.shape_cast %154 : vector<2x128xf32> to vector<1x1x2x128xf32>
    tpu.vector_store %arg4[%c0_66, %c5_67, %c0_68, %c0_69], %157 {strides = array<i32>} : memref<2x8x2x128xf32, #tpu.memory_space<vmem>>, vector<1x1x2x128xf32>,
    %c6 = arith.constant 6 : index
    %c0_70 = arith.constant 0 : index
    %158 = memref.load %arg2[%c6, %c0_70] : memref<8x4xf32, #tpu.memory_space<smem>>
    %159 = vector.extract_strided_slice %1 {offsets = [0, 0, 0], sizes = [1, 2, 128], strides = [1, 1, 1]} : vector<4x2x128xf32> to vector<1x2x128xf32>
    %160 = vector.shape_cast %159 : vector<1x2x128xf32> to vector<2x128xf32>
    %161 = vector.broadcast %158 : f32 to vector<2x128xf32>
    %162 = arith.mulf %161, %160 : vector<2x128xf32>
    %c6_71 = arith.constant 6 : index
    %c1_72 = arith.constant 1 : index
    %163 = memref.load %arg2[%c6_71, %c1_72] : memref<8x4xf32, #tpu.memory_space<smem>>
    %164 = vector.extract_strided_slice %1 {offsets = [1, 0, 0], sizes = [1, 2, 128], strides = [1, 1, 1]} : vector<4x2x128xf32> to vector<1x2x128xf32>
    %165 = vector.shape_cast %164 : vector<1x2x128xf32> to vector<2x128xf32>
    %166 = vector.broadcast %163 : f32 to vector<2x128xf32>
    %167 = arith.mulf %166, %165 : vector<2x128xf32>
    %168 = arith.addf %162, %167 : vector<2x128xf32>
    %c6_73 = arith.constant 6 : index
    %c2_74 = arith.constant 2 : index
    %169 = memref.load %arg2[%c6_73, %c2_74] : memref<8x4xf32, #tpu.memory_space<smem>>
    %170 = vector.extract_strided_slice %1 {offsets = [2, 0, 0], sizes = [1, 2, 128], strides = [1, 1, 1]} : vector<4x2x128xf32> to vector<1x2x128xf32>
    %171 = vector.shape_cast %170 : vector<1x2x128xf32> to vector<2x128xf32>
    %172 = vector.broadcast %169 : f32 to vector<2x128xf32>
    %173 = arith.mulf %172, %171 : vector<2x128xf32>
    %174 = arith.addf %168, %173 : vector<2x128xf32>
    %c6_75 = arith.constant 6 : index
    %c3_76 = arith.constant 3 : index
    %175 = memref.load %arg2[%c6_75, %c3_76] : memref<8x4xf32, #tpu.memory_space<smem>>
    %176 = vector.extract_strided_slice %1 {offsets = [3, 0, 0], sizes = [1, 2, 128], strides = [1, 1, 1]} : vector<4x2x128xf32> to vector<1x2x128xf32>
    %177 = vector.shape_cast %176 : vector<1x2x128xf32> to vector<2x128xf32>
    %178 = vector.broadcast %175 : f32 to vector<2x128xf32>
    %179 = arith.mulf %178, %177 : vector<2x128xf32>
    %180 = arith.addf %174, %179 : vector<2x128xf32>
    %c0_77 = arith.constant 0 : index
    %c6_78 = arith.constant 6 : index
    %c0_79 = arith.constant 0 : index
    %c0_80 = arith.constant 0 : index
    %181 = vector.load %arg4[%c0_77, %c6_78, %c0_79, %c0_80] : memref<2x8x2x128xf32, #tpu.memory_space<vmem>>, vector<1x1x2x128xf32>
    %182 = vector.shape_cast %181 : vector<1x1x2x128xf32> to vector<2x128xf32>
    %183 = vector.shape_cast %180 : vector<2x128xf32> to vector<1x1x2x128xf32>
    tpu.vector_store %arg4[%c0_77, %c6_78, %c0_79, %c0_80], %183 {strides = array<i32>} : memref<2x8x2x128xf32, #tpu.memory_space<vmem>>, vector<1x1x2x128xf32>,
    %c7 = arith.constant 7 : index
    %c0_81 = arith.constant 0 : index
    %184 = memref.load %arg2[%c7, %c0_81] : memref<8x4xf32, #tpu.memory_space<smem>>
    %185 = vector.extract_strided_slice %1 {offsets = [0, 0, 0], sizes = [1, 2, 128], strides = [1, 1, 1]} : vector<4x2x128xf32> to vector<1x2x128xf32>
    %186 = vector.shape_cast %185 : vector<1x2x128xf32> to vector<2x128xf32>
    %187 = vector.broadcast %184 : f32 to vector<2x128xf32>
    %188 = arith.mulf %187, %186 : vector<2x128xf32>
    %c7_82 = arith.constant 7 : index
    %c1_83 = arith.constant 1 : index
    %189 = memref.load %arg2[%c7_82, %c1_83] : memref<8x4xf32, #tpu.memory_space<smem>>
    %190 = vector.extract_strided_slice %1 {offsets = [1, 0, 0], sizes = [1, 2, 128], strides = [1, 1, 1]} : vector<4x2x128xf32> to vector<1x2x128xf32>
    %191 = vector.shape_cast %190 : vector<1x2x128xf32> to vector<2x128xf32>
    %192 = vector.broadcast %189 : f32 to vector<2x128xf32>
    %193 = arith.mulf %192, %191 : vector<2x128xf32>
    %194 = arith.addf %188, %193 : vector<2x128xf32>
    %c7_84 = arith.constant 7 : index
    %c2_85 = arith.constant 2 : index
    %195 = memref.load %arg2[%c7_84, %c2_85] : memref<8x4xf32, #tpu.memory_space<smem>>
    %196 = vector.extract_strided_slice %1 {offsets = [2, 0, 0], sizes = [1, 2, 128], strides = [1, 1, 1]} : vector<4x2x128xf32> to vector<1x2x128xf32>
    %197 = vector.shape_cast %196 : vector<1x2x128xf32> to vector<2x128xf32>
    %198 = vector.broadcast %195 : f32 to vector<2x128xf32>
    %199 = arith.mulf %198, %197 : vector<2x128xf32>
    %200 = arith.addf %194, %199 : vector<2x128xf32>
    %c7_86 = arith.constant 7 : index
    %c3_87 = arith.constant 3 : index
    %201 = memref.load %arg2[%c7_86, %c3_87] : memref<8x4xf32, #tpu.memory_space<smem>>
    %202 = vector.extract_strided_slice %1 {offsets = [3, 0, 0], sizes = [1, 2, 128], strides = [1, 1, 1]} : vector<4x2x128xf32> to vector<1x2x128xf32>
    %203 = vector.shape_cast %202 : vector<1x2x128xf32> to vector<2x128xf32>
    %204 = vector.broadcast %201 : f32 to vector<2x128xf32>
    %205 = arith.mulf %204, %203 : vector<2x128xf32>
    %206 = arith.addf %200, %205 : vector<2x128xf32>
    %c0_88 = arith.constant 0 : index
    %c7_89 = arith.constant 7 : index
    %c0_90 = arith.constant 0 : index
    %c0_91 = arith.constant 0 : index
    %207 = vector.load %arg4[%c0_88, %c7_89, %c0_90, %c0_91] : memref<2x8x2x128xf32, #tpu.memory_space<vmem>>, vector<1x1x2x128xf32>
    %208 = vector.shape_cast %207 : vector<1x1x2x128xf32> to vector<2x128xf32>
    %209 = vector.shape_cast %206 : vector<2x128xf32> to vector<1x1x2x128xf32>
    tpu.vector_store %arg4[%c0_88, %c7_89, %c0_90, %c0_91], %209 {strides = array<i32>} : memref<2x8x2x128xf32, #tpu.memory_space<vmem>>, vector<1x1x2x128xf32>,
    %c1_92 = arith.constant 1 : index
    %c0_93 = arith.constant 0 : index
    %c0_94 = arith.constant 0 : index
    %c0_95 = arith.constant 0 : index
    %210 = vector.load %arg3[%c1_92, %c0_93, %c0_94, %c0_95] : memref<2x4x2x128xf32, #tpu.memory_space<vmem>>, vector<1x4x2x128xf32>
    %211 = vector.shape_cast %210 : vector<1x4x2x128xf32> to vector<4x2x128xf32>
    %c0_96 = arith.constant 0 : index
    %c0_97 = arith.constant 0 : index
    %212 = memref.load %arg2[%c0_96, %c0_97] : memref<8x4xf32, #tpu.memory_space<smem>>
    %213 = vector.extract_strided_slice %211 {offsets = [0, 0, 0], sizes = [1, 2, 128], strides = [1, 1, 1]} : vector<4x2x128xf32> to vector<1x2x128xf32>
    %214 = vector.shape_cast %213 : vector<1x2x128xf32> to vector<2x128xf32>
    %215 = vector.broadcast %212 : f32 to vector<2x128xf32>
    %216 = arith.mulf %215, %214 : vector<2x128xf32>
    %c0_98 = arith.constant 0 : index
    %c1_99 = arith.constant 1 : index
    %217 = memref.load %arg2[%c0_98, %c1_99] : memref<8x4xf32, #tpu.memory_space<smem>>
    %218 = vector.extract_strided_slice %211 {offsets = [1, 0, 0], sizes = [1, 2, 128], strides = [1, 1, 1]} : vector<4x2x128xf32> to vector<1x2x128xf32>
    %219 = vector.shape_cast %218 : vector<1x2x128xf32> to vector<2x128xf32>
    %220 = vector.broadcast %217 : f32 to vector<2x128xf32>
    %221 = arith.mulf %220, %219 : vector<2x128xf32>
    %222 = arith.addf %216, %221 : vector<2x128xf32>
    %c0_100 = arith.constant 0 : index
    %c2_101 = arith.constant 2 : index
    %223 = memref.load %arg2[%c0_100, %c2_101] : memref<8x4xf32, #tpu.memory_space<smem>>
    %224 = vector.extract_strided_slice %211 {offsets = [2, 0, 0], sizes = [1, 2, 128], strides = [1, 1, 1]} : vector<4x2x128xf32> to vector<1x2x128xf32>
    %225 = vector.shape_cast %224 : vector<1x2x128xf32> to vector<2x128xf32>
    %226 = vector.broadcast %223 : f32 to vector<2x128xf32>
    %227 = arith.mulf %226, %225 : vector<2x128xf32>
    %228 = arith.addf %222, %227 : vector<2x128xf32>
    %c0_102 = arith.constant 0 : index
    %c3_103 = arith.constant 3 : index
    %229 = memref.load %arg2[%c0_102, %c3_103] : memref<8x4xf32, #tpu.memory_space<smem>>
    %230 = vector.extract_strided_slice %211 {offsets = [3, 0, 0], sizes = [1, 2, 128], strides = [1, 1, 1]} : vector<4x2x128xf32> to vector<1x2x128xf32>
    %231 = vector.shape_cast %230 : vector<1x2x128xf32> to vector<2x128xf32>
    %232 = vector.broadcast %229 : f32 to vector<2x128xf32>
    %233 = arith.mulf %232, %231 : vector<2x128xf32>
    %234 = arith.addf %228, %233 : vector<2x128xf32>
    %c1_104 = arith.constant 1 : index
    %c0_105 = arith.constant 0 : index
    %c0_106 = arith.constant 0 : index
    %c0_107 = arith.constant 0 : index
    %235 = vector.load %arg4[%c1_104, %c0_105, %c0_106, %c0_107] : memref<2x8x2x128xf32, #tpu.memory_space<vmem>>, vector<1x1x2x128xf32>
    %236 = vector.shape_cast %235 : vector<1x1x2x128xf32> to vector<2x128xf32>
    %237 = vector.shape_cast %234 : vector<2x128xf32> to vector<1x1x2x128xf32>
    tpu.vector_store %arg4[%c1_104, %c0_105, %c0_106, %c0_107], %237 {strides = array<i32>} : memref<2x8x2x128xf32, #tpu.memory_space<vmem>>, vector<1x1x2x128xf32>,
    %c1_108 = arith.constant 1 : index
    %c0_109 = arith.constant 0 : index
    %238 = memref.load %arg2[%c1_108, %c0_109] : memref<8x4xf32, #tpu.memory_space<smem>>
    %239 = vector.extract_strided_slice %211 {offsets = [0, 0, 0], sizes = [1, 2, 128], strides = [1, 1, 1]} : vector<4x2x128xf32> to vector<1x2x128xf32>
    %240 = vector.shape_cast %239 : vector<1x2x128xf32> to vector<2x128xf32>
    %241 = vector.broadcast %238 : f32 to vector<2x128xf32>
    %242 = arith.mulf %241, %240 : vector<2x128xf32>
    %c1_110 = arith.constant 1 : index
    %c1_111 = arith.constant 1 : index
    %243 = memref.load %arg2[%c1_110, %c1_111] : memref<8x4xf32, #tpu.memory_space<smem>>
    %244 = vector.extract_strided_slice %211 {offsets = [1, 0, 0], sizes = [1, 2, 128], strides = [1, 1, 1]} : vector<4x2x128xf32> to vector<1x2x128xf32>
    %245 = vector.shape_cast %244 : vector<1x2x128xf32> to vector<2x128xf32>
    %246 = vector.broadcast %243 : f32 to vector<2x128xf32>
    %247 = arith.mulf %246, %245 : vector<2x128xf32>
    %248 = arith.addf %242, %247 : vector<2x128xf32>
    %c1_112 = arith.constant 1 : index
    %c2_113 = arith.constant 2 : index
    %249 = memref.load %arg2[%c1_112, %c2_113] : memref<8x4xf32, #tpu.memory_space<smem>>
    %250 = vector.extract_strided_slice %211 {offsets = [2, 0, 0], sizes = [1, 2, 128], strides = [1, 1, 1]} : vector<4x2x128xf32> to vector<1x2x128xf32>
    %251 = vector.shape_cast %250 : vector<1x2x128xf32> to vector<2x128xf32>
    %252 = vector.broadcast %249 : f32 to vector<2x128xf32>
    %253 = arith.mulf %252, %251 : vector<2x128xf32>
    %254 = arith.addf %248, %253 : vector<2x128xf32>
    %c1_114 = arith.constant 1 : index
    %c3_115 = arith.constant 3 : index
    %255 = memref.load %arg2[%c1_114, %c3_115] : memref<8x4xf32, #tpu.memory_space<smem>>
    %256 = vector.extract_strided_slice %211 {offsets = [3, 0, 0], sizes = [1, 2, 128], strides = [1, 1, 1]} : vector<4x2x128xf32> to vector<1x2x128xf32>
    %257 = vector.shape_cast %256 : vector<1x2x128xf32> to vector<2x128xf32>
    %258 = vector.broadcast %255 : f32 to vector<2x128xf32>
    %259 = arith.mulf %258, %257 : vector<2x128xf32>
    %260 = arith.addf %254, %259 : vector<2x128xf32>
    %c1_116 = arith.constant 1 : index
    %c1_117 = arith.constant 1 : index
    %c0_118 = arith.constant 0 : index
    %c0_119 = arith.constant 0 : index
    %261 = vector.load %arg4[%c1_116, %c1_117, %c0_118, %c0_119] : memref<2x8x2x128xf32, #tpu.memory_space<vmem>>, vector<1x1x2x128xf32>
    %262 = vector.shape_cast %261 : vector<1x1x2x128xf32> to vector<2x128xf32>
    %263 = vector.shape_cast %260 : vector<2x128xf32> to vector<1x1x2x128xf32>
    tpu.vector_store %arg4[%c1_116, %c1_117, %c0_118, %c0_119], %263 {strides = array<i32>} : memref<2x8x2x128xf32, #tpu.memory_space<vmem>>, vector<1x1x2x128xf32>,
    %c2_120 = arith.constant 2 : index
    %c0_121 = arith.constant 0 : index
    %264 = memref.load %arg2[%c2_120, %c0_121] : memref<8x4xf32, #tpu.memory_space<smem>>
    %265 = vector.extract_strided_slice %211 {offsets = [0, 0, 0], sizes = [1, 2, 128], strides = [1, 1, 1]} : vector<4x2x128xf32> to vector<1x2x128xf32>
    %266 = vector.shape_cast %265 : vector<1x2x128xf32> to vector<2x128xf32>
    %267 = vector.broadcast %264 : f32 to vector<2x128xf32>
    %268 = arith.mulf %267, %266 : vector<2x128xf32>
    %c2_122 = arith.constant 2 : index
    %c1_123 = arith.constant 1 : index
    %269 = memref.load %arg2[%c2_122, %c1_123] : memref<8x4xf32, #tpu.memory_space<smem>>
    %270 = vector.extract_strided_slice %211 {offsets = [1, 0, 0], sizes = [1, 2, 128], strides = [1, 1, 1]} : vector<4x2x128xf32> to vector<1x2x128xf32>
    %271 = vector.shape_cast %270 : vector<1x2x128xf32> to vector<2x128xf32>
    %272 = vector.broadcast %269 : f32 to vector<2x128xf32>
    %273 = arith.mulf %272, %271 : vector<2x128xf32>
    %274 = arith.addf %268, %273 : vector<2x128xf32>
    %c2_124 = arith.constant 2 : index
    %c2_125 = arith.constant 2 : index
    %275 = memref.load %arg2[%c2_124, %c2_125] : memref<8x4xf32, #tpu.memory_space<smem>>
    %276 = vector.extract_strided_slice %211 {offsets = [2, 0, 0], sizes = [1, 2, 128], strides = [1, 1, 1]} : vector<4x2x128xf32> to vector<1x2x128xf32>
    %277 = vector.shape_cast %276 : vector<1x2x128xf32> to vector<2x128xf32>
    %278 = vector.broadcast %275 : f32 to vector<2x128xf32>
    %279 = arith.mulf %278, %277 : vector<2x128xf32>
    %280 = arith.addf %274, %279 : vector<2x128xf32>
    %c2_126 = arith.constant 2 : index
    %c3_127 = arith.constant 3 : index
    %281 = memref.load %arg2[%c2_126, %c3_127] : memref<8x4xf32, #tpu.memory_space<smem>>
    %282 = vector.extract_strided_slice %211 {offsets = [3, 0, 0], sizes = [1, 2, 128], strides = [1, 1, 1]} : vector<4x2x128xf32> to vector<1x2x128xf32>
    %283 = vector.shape_cast %282 : vector<1x2x128xf32> to vector<2x128xf32>
    %284 = vector.broadcast %281 : f32 to vector<2x128xf32>
    %285 = arith.mulf %284, %283 : vector<2x128xf32>
    %286 = arith.addf %280, %285 : vector<2x128xf32>
    %c1_128 = arith.constant 1 : index
    %c2_129 = arith.constant 2 : index
    %c0_130 = arith.constant 0 : index
    %c0_131 = arith.constant 0 : index
    %287 = vector.load %arg4[%c1_128, %c2_129, %c0_130, %c0_131] : memref<2x8x2x128xf32, #tpu.memory_space<vmem>>, vector<1x1x2x128xf32>
    %288 = vector.shape_cast %287 : vector<1x1x2x128xf32> to vector<2x128xf32>
    %289 = vector.shape_cast %286 : vector<2x128xf32> to vector<1x1x2x128xf32>
    tpu.vector_store %arg4[%c1_128, %c2_129, %c0_130, %c0_131], %289 {strides = array<i32>} : memref<2x8x2x128xf32, #tpu.memory_space<vmem>>, vector<1x1x2x128xf32>,
    %c3_132 = arith.constant 3 : index
    %c0_133 = arith.constant 0 : index
    %290 = memref.load %arg2[%c3_132, %c0_133] : memref<8x4xf32, #tpu.memory_space<smem>>
    %291 = vector.extract_strided_slice %211 {offsets = [0, 0, 0], sizes = [1, 2, 128], strides = [1, 1, 1]} : vector<4x2x128xf32> to vector<1x2x128xf32>
    %292 = vector.shape_cast %291 : vector<1x2x128xf32> to vector<2x128xf32>
    %293 = vector.broadcast %290 : f32 to vector<2x128xf32>
    %294 = arith.mulf %293, %292 : vector<2x128xf32>
    %c3_134 = arith.constant 3 : index
    %c1_135 = arith.constant 1 : index
    %295 = memref.load %arg2[%c3_134, %c1_135] : memref<8x4xf32, #tpu.memory_space<smem>>
    %296 = vector.extract_strided_slice %211 {offsets = [1, 0, 0], sizes = [1, 2, 128], strides = [1, 1, 1]} : vector<4x2x128xf32> to vector<1x2x128xf32>
    %297 = vector.shape_cast %296 : vector<1x2x128xf32> to vector<2x128xf32>
    %298 = vector.broadcast %295 : f32 to vector<2x128xf32>
    %299 = arith.mulf %298, %297 : vector<2x128xf32>
    %300 = arith.addf %294, %299 : vector<2x128xf32>
    %c3_136 = arith.constant 3 : index
    %c2_137 = arith.constant 2 : index
    %301 = memref.load %arg2[%c3_136, %c2_137] : memref<8x4xf32, #tpu.memory_space<smem>>
    %302 = vector.extract_strided_slice %211 {offsets = [2, 0, 0], sizes = [1, 2, 128], strides = [1, 1, 1]} : vector<4x2x128xf32> to vector<1x2x128xf32>
    %303 = vector.shape_cast %302 : vector<1x2x128xf32> to vector<2x128xf32>
    %304 = vector.broadcast %301 : f32 to vector<2x128xf32>
    %305 = arith.mulf %304, %303 : vector<2x128xf32>
    %306 = arith.addf %300, %305 : vector<2x128xf32>
    %c3_138 = arith.constant 3 : index
    %c3_139 = arith.constant 3 : index
    %307 = memref.load %arg2[%c3_138, %c3_139] : memref<8x4xf32, #tpu.memory_space<smem>>
    %308 = vector.extract_strided_slice %211 {offsets = [3, 0, 0], sizes = [1, 2, 128], strides = [1, 1, 1]} : vector<4x2x128xf32> to vector<1x2x128xf32>
    %309 = vector.shape_cast %308 : vector<1x2x128xf32> to vector<2x128xf32>
    %310 = vector.broadcast %307 : f32 to vector<2x128xf32>
    %311 = arith.mulf %310, %309 : vector<2x128xf32>
    %312 = arith.addf %306, %311 : vector<2x128xf32>
    %c1_140 = arith.constant 1 : index
    %c3_141 = arith.constant 3 : index
    %c0_142 = arith.constant 0 : index
    %c0_143 = arith.constant 0 : index
    %313 = vector.load %arg4[%c1_140, %c3_141, %c0_142, %c0_143] : memref<2x8x2x128xf32, #tpu.memory_space<vmem>>, vector<1x1x2x128xf32>
    %314 = vector.shape_cast %313 : vector<1x1x2x128xf32> to vector<2x128xf32>
    %315 = vector.shape_cast %312 : vector<2x128xf32> to vector<1x1x2x128xf32>
    tpu.vector_store %arg4[%c1_140, %c3_141, %c0_142, %c0_143], %315 {strides = array<i32>} : memref<2x8x2x128xf32, #tpu.memory_space<vmem>>, vector<1x1x2x128xf32>,
    %c4_144 = arith.constant 4 : index
    %c0_145 = arith.constant 0 : index
    %316 = memref.load %arg2[%c4_144, %c0_145] : memref<8x4xf32, #tpu.memory_space<smem>>
    %317 = vector.extract_strided_slice %211 {offsets = [0, 0, 0], sizes = [1, 2, 128], strides = [1, 1, 1]} : vector<4x2x128xf32> to vector<1x2x128xf32>
    %318 = vector.shape_cast %317 : vector<1x2x128xf32> to vector<2x128xf32>
    %319 = vector.broadcast %316 : f32 to vector<2x128xf32>
    %320 = arith.mulf %319, %318 : vector<2x128xf32>
    %c4_146 = arith.constant 4 : index
    %c1_147 = arith.constant 1 : index
    %321 = memref.load %arg2[%c4_146, %c1_147] : memref<8x4xf32, #tpu.memory_space<smem>>
    %322 = vector.extract_strided_slice %211 {offsets = [1, 0, 0], sizes = [1, 2, 128], strides = [1, 1, 1]} : vector<4x2x128xf32> to vector<1x2x128xf32>
    %323 = vector.shape_cast %322 : vector<1x2x128xf32> to vector<2x128xf32>
    %324 = vector.broadcast %321 : f32 to vector<2x128xf32>
    %325 = arith.mulf %324, %323 : vector<2x128xf32>
    %326 = arith.addf %320, %325 : vector<2x128xf32>
    %c4_148 = arith.constant 4 : index
    %c2_149 = arith.constant 2 : index
    %327 = memref.load %arg2[%c4_148, %c2_149] : memref<8x4xf32, #tpu.memory_space<smem>>
    %328 = vector.extract_strided_slice %211 {offsets = [2, 0, 0], sizes = [1, 2, 128], strides = [1, 1, 1]} : vector<4x2x128xf32> to vector<1x2x128xf32>
    %329 = vector.shape_cast %328 : vector<1x2x128xf32> to vector<2x128xf32>
    %330 = vector.broadcast %327 : f32 to vector<2x128xf32>
    %331 = arith.mulf %330, %329 : vector<2x128xf32>
    %332 = arith.addf %326, %331 : vector<2x128xf32>
    %c4_150 = arith.constant 4 : index
    %c3_151 = arith.constant 3 : index
    %333 = memref.load %arg2[%c4_150, %c3_151] : memref<8x4xf32, #tpu.memory_space<smem>>
    %334 = vector.extract_strided_slice %211 {offsets = [3, 0, 0], sizes = [1, 2, 128], strides = [1, 1, 1]} : vector<4x2x128xf32> to vector<1x2x128xf32>
    %335 = vector.shape_cast %334 : vector<1x2x128xf32> to vector<2x128xf32>
    %336 = vector.broadcast %333 : f32 to vector<2x128xf32>
    %337 = arith.mulf %336, %335 : vector<2x128xf32>
    %338 = arith.addf %332, %337 : vector<2x128xf32>
    %c1_152 = arith.constant 1 : index
    %c4_153 = arith.constant 4 : index
    %c0_154 = arith.constant 0 : index
    %c0_155 = arith.constant 0 : index
    %339 = vector.load %arg4[%c1_152, %c4_153, %c0_154, %c0_155] : memref<2x8x2x128xf32, #tpu.memory_space<vmem>>, vector<1x1x2x128xf32>
    %340 = vector.shape_cast %339 : vector<1x1x2x128xf32> to vector<2x128xf32>
    %341 = vector.shape_cast %338 : vector<2x128xf32> to vector<1x1x2x128xf32>
    tpu.vector_store %arg4[%c1_152, %c4_153, %c0_154, %c0_155], %341 {strides = array<i32>} : memref<2x8x2x128xf32, #tpu.memory_space<vmem>>, vector<1x1x2x128xf32>,
    %c5_156 = arith.constant 5 : index
    %c0_157 = arith.constant 0 : index
    %342 = memref.load %arg2[%c5_156, %c0_157] : memref<8x4xf32, #tpu.memory_space<smem>>
    %343 = vector.extract_strided_slice %211 {offsets = [0, 0, 0], sizes = [1, 2, 128], strides = [1, 1, 1]} : vector<4x2x128xf32> to vector<1x2x128xf32>
    %344 = vector.shape_cast %343 : vector<1x2x128xf32> to vector<2x128xf32>
    %345 = vector.broadcast %342 : f32 to vector<2x128xf32>
    %346 = arith.mulf %345, %344 : vector<2x128xf32>
    %c5_158 = arith.constant 5 : index
    %c1_159 = arith.constant 1 : index
    %347 = memref.load %arg2[%c5_158, %c1_159] : memref<8x4xf32, #tpu.memory_space<smem>>
    %348 = vector.extract_strided_slice %211 {offsets = [1, 0, 0], sizes = [1, 2, 128], strides = [1, 1, 1]} : vector<4x2x128xf32> to vector<1x2x128xf32>
    %349 = vector.shape_cast %348 : vector<1x2x128xf32> to vector<2x128xf32>
    %350 = vector.broadcast %347 : f32 to vector<2x128xf32>
    %351 = arith.mulf %350, %349 : vector<2x128xf32>
    %352 = arith.addf %346, %351 : vector<2x128xf32>
    %c5_160 = arith.constant 5 : index
    %c2_161 = arith.constant 2 : index
    %353 = memref.load %arg2[%c5_160, %c2_161] : memref<8x4xf32, #tpu.memory_space<smem>>
    %354 = vector.extract_strided_slice %211 {offsets = [2, 0, 0], sizes = [1, 2, 128], strides = [1, 1, 1]} : vector<4x2x128xf32> to vector<1x2x128xf32>
    %355 = vector.shape_cast %354 : vector<1x2x128xf32> to vector<2x128xf32>
    %356 = vector.broadcast %353 : f32 to vector<2x128xf32>
    %357 = arith.mulf %356, %355 : vector<2x128xf32>
    %358 = arith.addf %352, %357 : vector<2x128xf32>
    %c5_162 = arith.constant 5 : index
    %c3_163 = arith.constant 3 : index
    %359 = memref.load %arg2[%c5_162, %c3_163] : memref<8x4xf32, #tpu.memory_space<smem>>
    %360 = vector.extract_strided_slice %211 {offsets = [3, 0, 0], sizes = [1, 2, 128], strides = [1, 1, 1]} : vector<4x2x128xf32> to vector<1x2x128xf32>
    %361 = vector.shape_cast %360 : vector<1x2x128xf32> to vector<2x128xf32>
    %362 = vector.broadcast %359 : f32 to vector<2x128xf32>
    %363 = arith.mulf %362, %361 : vector<2x128xf32>
    %364 = arith.addf %358, %363 : vector<2x128xf32>
    %c1_164 = arith.constant 1 : index
    %c5_165 = arith.constant 5 : index
    %c0_166 = arith.constant 0 : index
    %c0_167 = arith.constant 0 : index
    %365 = vector.load %arg4[%c1_164, %c5_165, %c0_166, %c0_167] : memref<2x8x2x128xf32, #tpu.memory_space<vmem>>, vector<1x1x2x128xf32>
    %366 = vector.shape_cast %365 : vector<1x1x2x128xf32> to vector<2x128xf32>
    %367 = vector.shape_cast %364 : vector<2x128xf32> to vector<1x1x2x128xf32>
    tpu.vector_store %arg4[%c1_164, %c5_165, %c0_166, %c0_167], %367 {strides = array<i32>} : memref<2x8x2x128xf32, #tpu.memory_space<vmem>>, vector<1x1x2x128xf32>,
    %c6_168 = arith.constant 6 : index
    %c0_169 = arith.constant 0 : index
    %368 = memref.load %arg2[%c6_168, %c0_169] : memref<8x4xf32, #tpu.memory_space<smem>>
    %369 = vector.extract_strided_slice %211 {offsets = [0, 0, 0], sizes = [1, 2, 128], strides = [1, 1, 1]} : vector<4x2x128xf32> to vector<1x2x128xf32>
    %370 = vector.shape_cast %369 : vector<1x2x128xf32> to vector<2x128xf32>
    %371 = vector.broadcast %368 : f32 to vector<2x128xf32>
    %372 = arith.mulf %371, %370 : vector<2x128xf32>
    %c6_170 = arith.constant 6 : index
    %c1_171 = arith.constant 1 : index
    %373 = memref.load %arg2[%c6_170, %c1_171] : memref<8x4xf32, #tpu.memory_space<smem>>
    %374 = vector.extract_strided_slice %211 {offsets = [1, 0, 0], sizes = [1, 2, 128], strides = [1, 1, 1]} : vector<4x2x128xf32> to vector<1x2x128xf32>
    %375 = vector.shape_cast %374 : vector<1x2x128xf32> to vector<2x128xf32>
    %376 = vector.broadcast %373 : f32 to vector<2x128xf32>
    %377 = arith.mulf %376, %375 : vector<2x128xf32>
    %378 = arith.addf %372, %377 : vector<2x128xf32>
    %c6_172 = arith.constant 6 : index
    %c2_173 = arith.constant 2 : index
    %379 = memref.load %arg2[%c6_172, %c2_173] : memref<8x4xf32, #tpu.memory_space<smem>>
    %380 = vector.extract_strided_slice %211 {offsets = [2, 0, 0], sizes = [1, 2, 128], strides = [1, 1, 1]} : vector<4x2x128xf32> to vector<1x2x128xf32>
    %381 = vector.shape_cast %380 : vector<1x2x128xf32> to vector<2x128xf32>
    %382 = vector.broadcast %379 : f32 to vector<2x128xf32>
    %383 = arith.mulf %382, %381 : vector<2x128xf32>
    %384 = arith.addf %378, %383 : vector<2x128xf32>
    %c6_174 = arith.constant 6 : index
    %c3_175 = arith.constant 3 : index
    %385 = memref.load %arg2[%c6_174, %c3_175] : memref<8x4xf32, #tpu.memory_space<smem>>
    %386 = vector.extract_strided_slice %211 {offsets = [3, 0, 0], sizes = [1, 2, 128], strides = [1, 1, 1]} : vector<4x2x128xf32> to vector<1x2x128xf32>
    %387 = vector.shape_cast %386 : vector<1x2x128xf32> to vector<2x128xf32>
    %388 = vector.broadcast %385 : f32 to vector<2x128xf32>
    %389 = arith.mulf %388, %387 : vector<2x128xf32>
    %390 = arith.addf %384, %389 : vector<2x128xf32>
    %c1_176 = arith.constant 1 : index
    %c6_177 = arith.constant 6 : index
    %c0_178 = arith.constant 0 : index
    %c0_179 = arith.constant 0 : index
    %391 = vector.load %arg4[%c1_176, %c6_177, %c0_178, %c0_179] : memref<2x8x2x128xf32, #tpu.memory_space<vmem>>, vector<1x1x2x128xf32>
    %392 = vector.shape_cast %391 : vector<1x1x2x128xf32> to vector<2x128xf32>
    %393 = vector.shape_cast %390 : vector<2x128xf32> to vector<1x1x2x128xf32>
    tpu.vector_store %arg4[%c1_176, %c6_177, %c0_178, %c0_179], %393 {strides = array<i32>} : memref<2x8x2x128xf32, #tpu.memory_space<vmem>>, vector<1x1x2x128xf32>,
    %c7_180 = arith.constant 7 : index
    %c0_181 = arith.constant 0 : index
    %394 = memref.load %arg2[%c7_180, %c0_181] : memref<8x4xf32, #tpu.memory_space<smem>>
    %395 = vector.extract_strided_slice %211 {offsets = [0, 0, 0], sizes = [1, 2, 128], strides = [1, 1, 1]} : vector<4x2x128xf32> to vector<1x2x128xf32>
    %396 = vector.shape_cast %395 : vector<1x2x128xf32> to vector<2x128xf32>
    %397 = vector.broadcast %394 : f32 to vector<2x128xf32>
    %398 = arith.mulf %397, %396 : vector<2x128xf32>
    %c7_182 = arith.constant 7 : index
    %c1_183 = arith.constant 1 : index
    %399 = memref.load %arg2[%c7_182, %c1_183] : memref<8x4xf32, #tpu.memory_space<smem>>
    %400 = vector.extract_strided_slice %211 {offsets = [1, 0, 0], sizes = [1, 2, 128], strides = [1, 1, 1]} : vector<4x2x128xf32> to vector<1x2x128xf32>
    %401 = vector.shape_cast %400 : vector<1x2x128xf32> to vector<2x128xf32>
    %402 = vector.broadcast %399 : f32 to vector<2x128xf32>
    %403 = arith.mulf %402, %401 : vector<2x128xf32>
    %404 = arith.addf %398, %403 : vector<2x128xf32>
    %c7_184 = arith.constant 7 : index
    %c2_185 = arith.constant 2 : index
    %405 = memref.load %arg2[%c7_184, %c2_185] : memref<8x4xf32, #tpu.memory_space<smem>>
    %406 = vector.extract_strided_slice %211 {offsets = [2, 0, 0], sizes = [1, 2, 128], strides = [1, 1, 1]} : vector<4x2x128xf32> to vector<1x2x128xf32>
    %407 = vector.shape_cast %406 : vector<1x2x128xf32> to vector<2x128xf32>
    %408 = vector.broadcast %405 : f32 to vector<2x128xf32>
    %409 = arith.mulf %408, %407 : vector<2x128xf32>
    %410 = arith.addf %404, %409 : vector<2x128xf32>
    %c7_186 = arith.constant 7 : index
    %c3_187 = arith.constant 3 : index
    %411 = memref.load %arg2[%c7_186, %c3_187] : memref<8x4xf32, #tpu.memory_space<smem>>
    %412 = vector.extract_strided_slice %211 {offsets = [3, 0, 0], sizes = [1, 2, 128], strides = [1, 1, 1]} : vector<4x2x128xf32> to vector<1x2x128xf32>
    %413 = vector.shape_cast %412 : vector<1x2x128xf32> to vector<2x128xf32>
    %414 = vector.broadcast %411 : f32 to vector<2x128xf32>
    %415 = arith.mulf %414, %413 : vector<2x128xf32>
    %416 = arith.addf %410, %415 : vector<2x128xf32>
    %c1_188 = arith.constant 1 : index
    %c7_189 = arith.constant 7 : index
    %c0_190 = arith.constant 0 : index
    %c0_191 = arith.constant 0 : index
    %417 = vector.load %arg4[%c1_188, %c7_189, %c0_190, %c0_191] : memref<2x8x2x128xf32, #tpu.memory_space<vmem>>, vector<1x1x2x128xf32>
    %418 = vector.shape_cast %417 : vector<1x1x2x128xf32> to vector<2x128xf32>
    %419 = vector.shape_cast %416 : vector<2x128xf32> to vector<1x1x2x128xf32>
    tpu.vector_store %arg4[%c1_188, %c7_189, %c0_190, %c0_191], %419 {strides = array<i32>} : memref<2x8x2x128xf32, #tpu.memory_space<vmem>>, vector<1x1x2x128xf32>,
    return
  }
  func.func @transform_0(%arg0: i32, %arg1: i32) -> (i32, i32) {
    %c0_i32 = arith.constant 0 : i32
    %c0_i32_0 = arith.constant 0 : i32
    %c0_i32_1 = arith.constant 0 : i32
    return %c0_i32, %c0_i32_0 : i32, i32
  }
  func.func @transform_1(%arg0: i32, %arg1: i32) -> (i32, i32, i32, i32) {
    %c0_i32 = arith.constant 0 : i32
    %c0_i32_0 = arith.constant 0 : i32
    %c0_i32_1 = arith.constant 0 : i32
    return %arg0, %c0_i32, %arg1, %c0_i32_0 : i32, i32, i32, i32
  }
  func.func @transform_2(%arg0: i32, %arg1: i32) -> (i32, i32, i32, i32) {
    %c0_i32 = arith.constant 0 : i32
    %c0_i32_0 = arith.constant 0 : i32
    %c0_i32_1 = arith.constant 0 : i32
    return %arg0, %c0_i32, %arg1, %c0_i32_0 : i32, i32, i32, i32
  }
}

</mosaic_0001>

<llo_original>
// kernel: tpu_custom_call.1
$region0: #{tpu_custom_call.1}
  #allocation0 [shape = 'u32[]', space=smem, size = 0x4, offset = 0x4, fixed_abs, tag = 'smem constant byte address 0x4 - core index']
  #allocation1 [shape = 'u32[144,128]{1,0:T(1,128)}', space=vmem, size = 0x12000, scoped, tag = 'internal scratch']
  %s0 = inlined_call_operand.vmem [shape: f32[8,4], index: 0, kind: input, shape index: {}]
  %s1 = inlined_call_operand.hbm [shape: f32[2,4,2,128], index: 1, kind: input, shape index: {}]
  %s2 = inlined_call_operand.hbm [shape: f32[2,8,2,128], index: 2, kind: output, shape index: {}]
  %s3 = sld [smem:[#allocation0]]
  $region26: #{tpu_custom_call.1} parent=0
    _
  %s5 = ssub.s32 1, %s3
  %s6 = scalar_select 0, %s5, %s3
  $region1: #{tpu_custom_call.1} parent=0
    #allocation2 [shape = 'u8[4096]{0}', space=smem, size = 0x1000, scoped, tag = 'input window, operand 0, single buffered']
    #allocation3 [shape = 's32[1]{0}', space=sflag, size = 0x4, scoped, tag = 'scoped memory for tpu_custom_call.1']
    #allocation4 [shape = 's32[1]{0}', space=sflag, size = 0x4, scoped, tag = 'scoped memory for tpu_custom_call.1']
    #allocation5 [shape = 's32[1]{0}', space=sflag, size = 0x4, scoped, tag = 'scoped memory for tpu_custom_call.1']
    #allocation6 [shape = 'u8[8192]{0}', space=vmem, size = 0x2000, scoped, tag = 'input window, operand 1, single buffered']
    #allocation7 [shape = 'u8[16384]{0}', space=vmem, size = 0x4000, scoped, tag = 'output window, operand 0, single buffered']
    %7 = vsyncpa [#allocation5], 0
    %8 = vsyncpa [#allocation3], 0
    %9 = vsyncpa [#allocation4], 0
    // Predicated region
    $region2: #{tpu_custom_call.1} parent=1 // pred_check
      _
    $region3: #{tpu_custom_call.1} parent=1 // pred_check_branch
      %11 = sbr.rel (0) target = $region5
    $region4: #{tpu_custom_call.1} parent=1 // pred_region
      %s13 = ssub.s32 128, 128
      %14 = vsyncadd [#allocation5], %s13
      %s16 = sshll.u32 %s0, 4
      %s17 = int_to_ptr.vmem [resolvable:$true] %s16
      %19 = dma.vmem_to_smem %s17, 128, [#allocation2], [#allocation5]
    $region5: #{tpu_custom_call.1} parent=1 // pred_fallthru
      _
    // Predicated region
    $region6: #{tpu_custom_call.1} parent=1 // pred_check
      _
    $region7: #{tpu_custom_call.1} parent=1 // pred_check_branch
      %21 = sbr.rel (0) target = $region9
    $region8: #{tpu_custom_call.1} parent=1 // pred_region
      %s23 = ssub.s32 256, 256
      %24 = vsyncadd [#allocation3], %s23
      %s25 = sshll.u32 [#allocation6], 4
      %s26 = int_to_ptr.vmem [resolvable:$true] %s25
      %31 = dma.hbm_to_vmem [thread:$0]  %s1, 256, %s26, [#allocation3], 32, 32, 2
    $region9: #{tpu_custom_call.1} parent=1 // pred_fallthru
      _
    // Predicated region
    $region10: #{tpu_custom_call.1} parent=1 // pred_check
      _
    $region11: #{tpu_custom_call.1} parent=1 // pred_check_branch
      %33 = sbr.rel (0) target = $region13
    $region12: #{tpu_custom_call.1} parent=1 // pred_region
      %34 = dma.done [#allocation5], 128
    $region13: #{tpu_custom_call.1} parent=1 // pred_fallthru
      _
    // Predicated region
    $region14: #{tpu_custom_call.1} parent=1 // pred_check
      _
    $region15: #{tpu_custom_call.1} parent=1 // pred_check_branch
      %36 = sbr.rel (0) target = $region17
    $region16: #{tpu_custom_call.1} parent=1 // pred_region
      %37 = dma.done [#allocation3], 256
    $region17: #{tpu_custom_call.1} parent=1 // pred_fallthru
      _
    %38 = sfence
    %v39 = vld [vmem:[#allocation6] sm:$0x3]
    %v40 = vld [vmem:[#allocation6 + $0x2] sm:$0x3]
    %v41 = vld [vmem:[#allocation6 + $0x4] sm:$0x3]
    %v42 = vld [vmem:[#allocation6 + $0x6] sm:$0x3]
    %s43 = sld [smem:[#allocation2]]
    %v44 = vstv %s43
    %v45 = vmul.f32 %v44, %v39
    %s46 = sld [smem:[#allocation2 + $0x1]]
    %v47 = vstv %s46
    %v48 = vmul.f32 %v47, %v40
    %v49 = vadd.f32 %v45, %v48
    %s50 = sld [smem:[#allocation2 + $0x2]]
    %v51 = vstv %s50
    %v52 = vmul.f32 %v51, %v41
    %v53 = vadd.f32 %v49, %v52
    %s54 = sld [smem:[#allocation2 + $0x3]]
    %v55 = vstv %s54
    %v56 = vmul.f32 %v55, %v42
    %v57 = vadd.f32 %v53, %v56
    %58 = vst [vmem:[#allocation7] sm:$0x3] %v57
    %s59 = sld [smem:[#allocation2 + $0x80]]
    %v60 = vstv %s59
    %v61 = vmul.f32 %v60, %v39
    %s62 = sld [smem:[#allocation2 + $0x81]]
    %v63 = vstv %s62
    %v64 = vmul.f32 %v63, %v40
    %v65 = vadd.f32 %v61, %v64
    %s66 = sld [smem:[#allocation2 + $0x82]]
    %v67 = vstv %s66
    %v68 = vmul.f32 %v67, %v41
    %v69 = vadd.f32 %v65, %v68
    %s70 = sld [smem:[#allocation2 + $0x83]]
    %v71 = vstv %s70
    %v72 = vmul.f32 %v71, %v42
    %v73 = vadd.f32 %v69, %v72
    %s74 = scalar_lea.vmem [#allocation7], 2
    %75 = vst [vmem:[%s74] sm:$0x3] %v73
    %s76 = sld [smem:[#allocation2 + $0x100]]
    %v77 = vstv %s76
    %v78 = vmul.f32 %v77, %v39
    %s79 = sld [smem:[#allocation2 + $0x101]]
    %v80 = vstv %s79
    %v81 = vmul.f32 %v80, %v40
    %v82 = vadd.f32 %v78, %v81
    %s83 = sld [smem:[#allocation2 + $0x102]]
    %v84 = vstv %s83
    %v85 = vmul.f32 %v84, %v41
    %v86 = vadd.f32 %v82, %v85
    %s87 = sld [smem:[#allocation2 + $0x103]]
    %v88 = vstv %s87
    %v89 = vmul.f32 %v88, %v42
    %v90 = vadd.f32 %v86, %v89
    %s91 = scalar_lea.vmem [#allocation7], 4
    %92 = vst [vmem:[%s91] sm:$0x3] %v90
    %s93 = sld [smem:[#allocation2 + $0x180]]
    %v94 = vstv %s93
    %v95 = vmul.f32 %v94, %v39
    %s96 = sld [smem:[#allocation2 + $0x181]]
    %v97 = vstv %s96
    %v98 = vmul.f32 %v97, %v40
    %v99 = vadd.f32 %v95, %v98
    %s100 = sld [smem:[#allocation2 + $0x182]]
    %v101 = vstv %s100
    %v102 = vmul.f32 %v101, %v41
    %v103 = vadd.f32 %v99, %v102
    %s104 = sld [smem:[#allocation2 + $0x183]]
    %v105 = vstv %s104
    %v106 = vmul.f32 %v105, %v42
    %v107 = vadd.f32 %v103, %v106
    %s108 = scalar_lea.vmem [#allocation7], 6
    %109 = vst [vmem:[%s108] sm:$0x3] %v107
    %s110 = sld [smem:[#allocation2 + $0x200]]
    %v111 = vstv %s110
    %v112 = vmul.f32 %v111, %v39
    %s113 = sld [smem:[#allocation2 + $0x201]]
    %v114 = vstv %s113
    %v115 = vmul.f32 %v114, %v40
    %v116 = vadd.f32 %v112, %v115
    %s117 = sld [smem:[#allocation2 + $0x202]]
    %v118 = vstv %s117
    %v119 = vmul.f32 %v118, %v41
    %v120 = vadd.f32 %v116, %v119
    %s121 = sld [smem:[#allocation2 + $0x203]]
    %v122 = vstv %s121
    %v123 = vmul.f32 %v122, %v42
    %v124 = vadd.f32 %v120, %v123
    %s125 = scalar_lea.vmem [#allocation7], 8
    %126 = vst [vmem:[%s125] sm:$0x3] %v124
    %s127 = sld [smem:[#allocation2 + $0x280]]
    %v128 = vstv %s127
    %v129 = vmul.f32 %v128, %v39
    %s130 = sld [smem:[#allocation2 + $0x281]]
    %v131 = vstv %s130
    %v132 = vmul.f32 %v131, %v40
    %v133 = vadd.f32 %v129, %v132
    %s134 = sld [smem:[#allocation2 + $0x282]]
    %v135 = vstv %s134
    %v136 = vmul.f32 %v135, %v41
    %v137 = vadd.f32 %v133, %v136
    %s138 = sld [smem:[#allocation2 + $0x283]]
    %v139 = vstv %s138
    %v140 = vmul.f32 %v139, %v42
    %v141 = vadd.f32 %v137, %v140
    %s142 = scalar_lea.vmem [#allocation7], 10
    %143 = vst [vmem:[%s142] sm:$0x3] %v141
    %s144 = sld [smem:[#allocation2 + $0x300]]
    %v145 = vstv %s144
    %v146 = vmul.f32 %v145, %v39
    %s147 = sld [smem:[#allocation2 + $0x301]]
    %v148 = vstv %s147
    %v149 = vmul.f32 %v148, %v40
    %v150 = vadd.f32 %v146, %v149
    %s151 = sld [smem:[#allocation2 + $0x302]]
    %v152 = vstv %s151
    %v153 = vmul.f32 %v152, %v41
    %v154 = vadd.f32 %v150, %v153
    %s155 = sld [smem:[#allocation2 + $0x303]]
    %v156 = vstv %s155
    %v157 = vmul.f32 %v156, %v42
    %v158 = vadd.f32 %v154, %v157
    %s159 = scalar_lea.vmem [#allocation7], 12
    %160 = vst [vmem:[%s159] sm:$0x3] %v158
    %s161 = sld [smem:[#allocation2 + $0x380]]
    %v162 = vstv %s161
    %v163 = vmul.f32 %v162, %v39
    %s164 = sld [smem:[#allocation2 + $0x381]]
    %v165 = vstv %s164
    %v166 = vmul.f32 %v165, %v40
    %v167 = vadd.f32 %v163, %v166
    %s168 = sld [smem:[#allocation2 + $0x382]]
    %v169 = vstv %s168
    %v170 = vmul.f32 %v169, %v41
    %v171 = vadd.f32 %v167, %v170
    %s172 = sld [smem:[#allocation2 + $0x383]]
    %v173 = vstv %s172
    %v174 = vmul.f32 %v173, %v42
    %v175 = vadd.f32 %v171, %v174
    %s176 = scalar_lea.vmem [#allocation7], 14
    %177 = vst [vmem:[%s176] sm:$0x3] %v175
    %s178 = scalar_lea.vmem [#allocation6], 8
    %v179 = vld [vmem:[%s178] sm:$0x3]
    %v180 = vld [vmem:[%s178 + $0x2] sm:$0x3]
    %v181 = vld [vmem:[%s178 + $0x4] sm:$0x3]
    %v182 = vld [vmem:[%s178 + $0x6] sm:$0x3]
    %s183 = sld [smem:[#allocation2]]
    %v184 = vstv %s183
    %v185 = vmul.f32 %v184, %v179
    %s186 = sld [smem:[#allocation2 + $0x1]]
    %v187 = vstv %s186
    %v188 = vmul.f32 %v187, %v180
    %v189 = vadd.f32 %v185, %v188
    %s190 = sld [smem:[#allocation2 + $0x2]]
    %v191 = vstv %s190
    %v192 = vmul.f32 %v191, %v181
    %v193 = vadd.f32 %v189, %v192
    %s194 = sld [smem:[#allocation2 + $0x3]]
    %v195 = vstv %s194
    %v196 = vmul.f32 %v195, %v182
    %v197 = vadd.f32 %v193, %v196
    %s198 = scalar_lea.vmem [#allocation7], 16
    %199 = vst [vmem:[%s198] sm:$0x3] %v197
    %s200 = sld [smem:[#allocation2 + $0x80]]
    %v201 = vstv %s200
    %v202 = vmul.f32 %v201, %v179
    %s203 = sld [smem:[#allocation2 + $0x81]]
    %v204 = vstv %s203
    %v205 = vmul.f32 %v204, %v180
    %v206 = vadd.f32 %v202, %v205
    %s207 = sld [smem:[#allocation2 + $0x82]]
    %v208 = vstv %s207
    %v209 = vmul.f32 %v208, %v181
    %v210 = vadd.f32 %v206, %v209
    %s211 = sld [smem:[#allocation2 + $0x83]]
    %v212 = vstv %s211
    %v213 = vmul.f32 %v212, %v182
    %v214 = vadd.f32 %v210, %v213
    %s215 = scalar_lea.vmem [#allocation7], 18
    %216 = vst [vmem:[%s215] sm:$0x3] %v214
    %s217 = sld [smem:[#allocation2 + $0x100]]
    %v218 = vstv %s217
    %v219 = vmul.f32 %v218, %v179
    %s220 = sld [smem:[#allocation2 + $0x101]]
    %v221 = vstv %s220
    %v222 = vmul.f32 %v221, %v180
    %v223 = vadd.f32 %v219, %v222
    %s224 = sld [smem:[#allocation2 + $0x102]]
    %v225 = vstv %s224
    %v226 = vmul.f32 %v225, %v181
    %v227 = vadd.f32 %v223, %v226
    %s228 = sld [smem:[#allocation2 + $0x103]]
    %v229 = vstv %s228
    %v230 = vmul.f32 %v229, %v182
    %v231 = vadd.f32 %v227, %v230
    %s232 = scalar_lea.vmem [#allocation7], 20
    %233 = vst [vmem:[%s232] sm:$0x3] %v231
    %s234 = sld [smem:[#allocation2 + $0x180]]
    %v235 = vstv %s234
    %v236 = vmul.f32 %v235, %v179
    %s237 = sld [smem:[#allocation2 + $0x181]]
    %v238 = vstv %s237
    %v239 = vmul.f32 %v238, %v180
    %v240 = vadd.f32 %v236, %v239
    %s241 = sld [smem:[#allocation2 + $0x182]]
    %v242 = vstv %s241
    %v243 = vmul.f32 %v242, %v181
    %v244 = vadd.f32 %v240, %v243
    %s245 = sld [smem:[#allocation2 + $0x183]]
    %v246 = vstv %s245
    %v247 = vmul.f32 %v246, %v182
    %v248 = vadd.f32 %v244, %v247
    %s249 = scalar_lea.vmem [#allocation7], 22
    %250 = vst [vmem:[%s249] sm:$0x3] %v248
    %s251 = sld [smem:[#allocation2 + $0x200]]
    %v252 = vstv %s251
    %v253 = vmul.f32 %v252, %v179
    %s254 = sld [smem:[#allocation2 + $0x201]]
    %v255 = vstv %s254
    %v256 = vmul.f32 %v255, %v180
    %v257 = vadd.f32 %v253, %v256
    %s258 = sld [smem:[#allocation2 + $0x202]]
    %v259 = vstv %s258
    %v260 = vmul.f32 %v259, %v181
    %v261 = vadd.f32 %v257, %v260
    %s262 = sld [smem:[#allocation2 + $0x203]]
    %v263 = vstv %s262
    %v264 = vmul.f32 %v263, %v182
    %v265 = vadd.f32 %v261, %v264
    %s266 = scalar_lea.vmem [#allocation7], 24
    %267 = vst [vmem:[%s266] sm:$0x3] %v265
    %s268 = sld [smem:[#allocation2 + $0x280]]
    %v269 = vstv %s268
    %v270 = vmul.f32 %v269, %v179
    %s271 = sld [smem:[#allocation2 + $0x281]]
    %v272 = vstv %s271
    %v273 = vmul.f32 %v272, %v180
    %v274 = vadd.f32 %v270, %v273
    %s275 = sld [smem:[#allocation2 + $0x282]]
    %v276 = vstv %s275
    %v277 = vmul.f32 %v276, %v181
    %v278 = vadd.f32 %v274, %v277
    %s279 = sld [smem:[#allocation2 + $0x283]]
    %v280 = vstv %s279
    %v281 = vmul.f32 %v280, %v182
    %v282 = vadd.f32 %v278, %v281
    %s283 = scalar_lea.vmem [#allocation7], 26
    %284 = vst [vmem:[%s283] sm:$0x3] %v282
    %s285 = sld [smem:[#allocation2 + $0x300]]
    %v286 = vstv %s285
    %v287 = vmul.f32 %v286, %v179
    %s288 = sld [smem:[#allocation2 + $0x301]]
    %v289 = vstv %s288
    %v290 = vmul.f32 %v289, %v180
    %v291 = vadd.f32 %v287, %v290
    %s292 = sld [smem:[#allocation2 + $0x302]]
    %v293 = vstv %s292
    %v294 = vmul.f32 %v293, %v181
    %v295 = vadd.f32 %v291, %v294
    %s296 = sld [smem:[#allocation2 + $0x303]]
    %v297 = vstv %s296
    %v298 = vmul.f32 %v297, %v182
    %v299 = vadd.f32 %v295, %v298
    %s300 = scalar_lea.vmem [#allocation7], 28
    %301 = vst [vmem:[%s300] sm:$0x3] %v299
    %s302 = sld [smem:[#allocation2 + $0x380]]
    %v303 = vstv %s302
    %v304 = vmul.f32 %v303, %v179
    %s305 = sld [smem:[#allocation2 + $0x381]]
    %v306 = vstv %s305
    %v307 = vmul.f32 %v306, %v180
    %v308 = vadd.f32 %v304, %v307
    %s309 = sld [smem:[#allocation2 + $0x382]]
    %v310 = vstv %s309
    %v311 = vmul.f32 %v310, %v181
    %v312 = vadd.f32 %v308, %v311
    %s313 = sld [smem:[#allocation2 + $0x383]]
    %v314 = vstv %s313
    %v315 = vmul.f32 %v314, %v182
    %v316 = vadd.f32 %v312, %v315
    %s317 = scalar_lea.vmem [#allocation7], 30
    %318 = vst [vmem:[%s317] sm:$0x3] %v316
    // Predicated region
    $region18: #{tpu_custom_call.1} parent=1 // pred_check
      _
    $region19: #{tpu_custom_call.1} parent=1 // pred_check_branch
      %320 = sbr.rel (0) target = $region21
    $region20: #{tpu_custom_call.1} parent=1 // pred_region
      %s322 = ssub.s32 512, 512
      %323 = vsyncadd [#allocation4], %s322
      %s324 = sshll.u32 [#allocation7], 4
      %s325 = int_to_ptr.vmem [resolvable:$true] %s324
      %330 = dma.vmem_to_hbm [thread:$0]  %s325, 512, %s2, [#allocation4], 32, 32, 2
    $region21: #{tpu_custom_call.1} parent=1 // pred_fallthru
      _
    // Predicated region
    $region22: #{tpu_custom_call.1} parent=1 // pred_check
      _
    $region23: #{tpu_custom_call.1} parent=1 // pred_check_branch
      %332 = sbr.rel (0) target = $region25
    $region24: #{tpu_custom_call.1} parent=1 // pred_region
      %333 = dma.done [#allocation4], 512
    $region25: #{tpu_custom_call.1} parent=1 // pred_fallthru
      _
    %334 = vsyncpa [#allocation3], 1
    %335 = vsyncpa [#allocation4], 1
    %336 = vsyncpa [#allocation5], 1

</llo_original>
